<compile_context>
chip_gen: v7x
topology: tpu7x:2x2x1
jax: 0.10.0
libtpu: 0.0.40
codegen_flags: <defaults>
</compile_context>

<pallas_src>
import functools
import math

import jax
import jax.numpy as jnp
from jax import lax
from jax.experimental import pallas as pl
from jax.experimental.pallas import tpu as pltpu

HIDDEN = 128
_TB_MAX = 2048  # keeps double-buffered activation tiles inside v5e's 16 MiB scoped VMEM


def _critic_kernel(s_ref, a_ref, w1s_ref, w1a_ref, b1_ref,
                   w2_ref, b2_ref, w3_ref, b3_ref, o_ref, *, ep_dtype):
    # fc1: two aligned-K bf16 matmuls (f32 acc) replace the concat'ed K=24 matmul.
    # Written back-to-back so v7x's MRB can accumulate them in place.
    acc1 = (jnp.dot(s_ref[...].astype(jnp.bfloat16), w1s_ref[...],
                    preferred_element_type=jnp.float32)
            + jnp.dot(a_ref[...].astype(jnp.bfloat16), w1a_ref[...],
                      preferred_element_type=jnp.float32))
    h1 = acc1.astype(ep_dtype) + b1_ref[...]
    h1 = jnp.maximum(h1, 0.01 * h1)                     # LeakyReLU(0.01)

    # fc2
    acc2 = jnp.dot(h1.astype(jnp.bfloat16), w2_ref[...],
                   preferred_element_type=jnp.float32)
    h2 = acc2.astype(ep_dtype) + b2_ref[...]
    h2 = jnp.maximum(h2, 0.01 * h2)

    # fc3: contract on H so q comes out as a lane-dense (1, tb) row.
    q = lax.dot_general(w3_ref[...], h2.astype(jnp.bfloat16),
                        dimension_numbers=(((1,), (1,)), ((), ())),
                        preferred_element_type=jnp.float32)
    o_ref[...] = (q + b3_ref[...]).astype(o_ref.dtype)


def _round_up(x, m):
    return ((x + m - 1) // m) * m


def _epilogue_dtype():
    """bf16 epilogues only where the VPU has bf16 VALUs (v6e / v7x)."""
    try:
        kind = jax.devices()[0].device_kind.lower()
    except Exception:
        return jnp.float32
    return jnp.bfloat16 if ("v6" in kind or "v7" in kind) else jnp.float32


def _tile_batch(B):
    """Padding-balanced batch tiling.

    * at most _TB_MAX rows per tile,
    * >= 2 tiles when B > 128 so v7x's second TensorCore gets work,
    * multi-tile: tb is a multiple of 128 (lane-aligned (1, tb) output blocks),
    * single-tile: tb == padded B (block == full array dims).
    """
    n_tiles = pl.cdiv(B, _TB_MAX)
    if n_tiles < 2 and B > 128:
        n_tiles = 2
    if n_tiles > 1:
        tb = _round_up(pl.cdiv(B, n_tiles), 128)
    else:
        tb = _round_up(max(B, 8), 8)
    return tb, tb * n_tiles, n_tiles


@jax.jit
def critic_forward(state, action, params):
    """state: (B, state_dim), action: (B, action_dim) -> (B, 1) f32."""
    w1, b1, w2, b2, w3, b3 = params
    B, state_dim = state.shape
    action_dim = action.shape[1]
    H = w2.shape[0]
    ep_dtype = _epilogue_dtype()

    # Weight prep (replaces torch.cat): split W1, bf16 at the MXU inputs.
    w1 = jnp.asarray(w1)
    w1_s = w1[:state_dim].astype(jnp.bfloat16)             # (state_dim, H)
    w1_a = w1[state_dim:].astype(jnp.bfloat16)             # (action_dim, H)
    w2_b = jnp.asarray(w2).astype(jnp.bfloat16)             # (H, H)
    w3_row = jnp.asarray(w3).reshape(1, H).astype(jnp.bfloat16)
    b1_r = jnp.asarray(b1).reshape(1, H).astype(ep_dtype)
    b2_r = jnp.asarray(b2).reshape(1, H).astype(ep_dtype)
    b3_r = jnp.asarray(b3).reshape(1, 1).astype(jnp.float32)

    tb, pb, n_tiles = _tile_batch(B)
    if pb != B:
        pad = ((0, pb - B), (0, 0))
        state = jnp.pad(state, pad)
        action = jnp.pad(action, pad)

    resident = lambda i: (0, 0)     # weights/biases stay in VMEM across the grid
    row_tile = lambda i: (i, 0)     # activation tiles stream over the batch
    col_tile = lambda i: (0, i)     # lane-dense q row tiles

    flops = 2 * pb * ((state_dim + action_dim) * H + H * H + H)
    bytes_accessed = (pb * (state_dim + action_dim) * state.dtype.itemsize  # acts in
                      + pb * 4                                              # q out
                      + ((state_dim + action_dim) * H + H * H + H) * 2      # bf16 W
                      + 2 * H * jnp.dtype(ep_dtype).itemsize + 4)           # biases

    out = pl.pallas_call(
        functools.partial(_critic_kernel, ep_dtype=ep_dtype),
        out_shape=jax.ShapeDtypeStruct((1, pb), jnp.float32),
        grid=(n_tiles,),
        in_specs=[
            pl.BlockSpec((tb, state_dim), row_tile),
            pl.BlockSpec((tb, action_dim), row_tile),
            pl.BlockSpec((state_dim, H), resident),
            pl.BlockSpec((action_dim, H), resident),
            pl.BlockSpec((1, H), resident),
            pl.BlockSpec((H, H), resident),
            pl.BlockSpec((1, H), resident),
            pl.BlockSpec((1, H), resident),
            pl.BlockSpec((1, 1), resident),
        ],
        out_specs=pl.BlockSpec((1, tb), col_tile),
        compiler_params=pltpu.CompilerParams(
            dimension_semantics=("parallel",)),
        cost_estimate=pl.CostEstimate(
            flops=flops, transcendentals=0, bytes_accessed=bytes_accessed),
    )(state, action, w1_s, w1_a, b1_r, w2_b, b2_r, w3_row, b3_r)

    return out[0, :B].reshape(B, 1)


def init_critic_params(key, state_dim, action_dim, hidden=HIDDEN):
    """Deterministic init mimicking nn.Linear default (U[-1/sqrt(fan_in), +])."""
    def linear(key, fan_in, fan_out):
        kw, kb = jax.random.split(key)
        bound = 1.0 / math.sqrt(fan_in)
        # stored as (in, out) so the kernel computes x @ W
        w = jax.random.uniform(kw, (fan_in, fan_out), jnp.float32, -bound, bound)
        b = jax.random.uniform(kb, (1, fan_out), jnp.float32, -bound, bound)
        return w, b

    k1, k2, k3 = jax.random.split(key, 3)
    w1, b1 = linear(k1, state_dim + action_dim, hidden)
    w2, b2 = linear(k2, hidden, hidden)
    w3, b3 = linear(k3, hidden, 1)
    return (w1, b1, w2, b2, w3, b3)


def _reference_forward_matched(state, action, params, ep_dtype):
    """Pure-JAX reference mirroring the kernel's bf16-MXU / ep_dtype-epilogue math."""
    w1, b1, w2, b2, w3, b3 = params
    sd = state.shape[1]
    f32, bf16 = jnp.float32, jnp.bfloat16
    acc1 = (jnp.dot(state.astype(bf16), w1[:sd].astype(bf16), preferred_element_type=f32)
            + jnp.dot(action.astype(bf16), w1[sd:].astype(bf16), preferred_element_type=f32))
    h1 = acc1.astype(ep_dtype) + b1.reshape(1, -1).astype(ep_dtype)
    h1 = jnp.maximum(h1, 0.01 * h1)
    acc2 = jnp.dot(h1.astype(bf16), w2.astype(bf16), preferred_element_type=f32)
    h2 = acc2.astype(ep_dtype) + b2.reshape(1, -1).astype(ep_dtype)
    h2 = jnp.maximum(h2, 0.01 * h2)
    q = jnp.dot(h2.astype(bf16), w3.astype(bf16), preferred_element_type=f32)
    return q + b3.reshape(1, -1)


def _reference_forward_f32(state, action, params):
    """Full-f32 reference (matches PyTorch module semantics)."""
    w1, b1, w2, b2, w3, b3 = params
    x = jnp.concatenate([state, action], axis=1)
    lrelu = lambda t: jnp.where(t > 0, t, 0.01 * t)
    h1 = lrelu(x @ w1 + b1.reshape(1, -1))
    h2 = lrelu(h1 @ w2 + b2.reshape(1, -1))
    return h2 @ w3 + b3.reshape(1, -1)


if __name__ == "__main__":
    key = jax.random.PRNGKey(0)
    kp = jax.random.fold_in(key, 7)

    state_dim, action_dim = 16, 8
    params = init_critic_params(kp, state_dim, action_dim)
    ep_dtype = _epilogue_dtype()

    # batch=10: partial single tile (padded to 16); batch=300: two-tile path
    # (tb=256, pb=512) exercising the lane-dense (1, tb) multi-block output.
    for batch in (10, 300):
        kb = jax.random.fold_in(key, batch)
        ksb, kab = jax.random.split(kb)
        state = jax.random.normal(ksb, (batch, state_dim), jnp.float32)
        action = jax.random.normal(kab, (batch, action_dim), jnp.float32)

        q = critic_forward(state, action, params)
        jax.block_until_ready(q)
        assert q.shape == (batch, 1)

        # Check against the reference that mirrors the kernel's arithmetic.
        q_matched = _reference_forward_matched(state, action, params, ep_dtype)
        assert jnp.allclose(q, q_matched, atol=1e-2, rtol=1e-2)

        # Loose check against the exact PyTorch-semantics f32 reference.
        q_f32 = _reference_forward_f32(state, action, params)
        assert jnp.allclose(q, q_f32, atol=1e-1, rtol=1e-1)

    print("KERNEL_OK")
</pallas_src>

<mosaic_0001>
module attributes {stable_mosaic.version = 11 : i64} {
  func.func @_critic_kernel(%arg0: i32, %arg1: memref<16x16xf32, #tpu.memory_space<vmem>>, %arg2: memref<16x8xf32, #tpu.memory_space<vmem>>, %arg3: memref<16x128xbf16, #tpu.memory_space<vmem>>, %arg4: memref<8x128xbf16, #tpu.memory_space<vmem>>, %arg5: memref<1x128xf32, #tpu.memory_space<vmem>>, %arg6: memref<128x128xbf16, #tpu.memory_space<vmem>>, %arg7: memref<1x128xf32, #tpu.memory_space<vmem>>, %arg8: memref<1x128xbf16, #tpu.memory_space<vmem>>, %arg9: memref<1x1xf32, #tpu.memory_space<vmem>>, %arg10: memref<1x16xf32, #tpu.memory_space<vmem>>) attributes {dimension_semantics = [#tpu.dimension_semantics<parallel>], iteration_bounds = array<i64: 1>, scalar_prefetch = 0 : i64, scratch_operands = 0 : i64, tpu.core_type = #tpu.core_type<tc>, window_params = [{transform_indices = @transform_0, window_bounds = array<i64: 16, 16>}, {transform_indices = @transform_1, window_bounds = array<i64: 16, 8>}, {pipeline_mode = #tpu.pipeline_mode<synchronous>, transform_indices = @transform_2, window_bounds = array<i64: 16, 128>}, {pipeline_mode = #tpu.pipeline_mode<synchronous>, transform_indices = @transform_3, window_bounds = array<i64: 8, 128>}, {pipeline_mode = #tpu.pipeline_mode<synchronous>, transform_indices = @transform_4, window_bounds = array<i64: 1, 128>}, {pipeline_mode = #tpu.pipeline_mode<synchronous>, transform_indices = @transform_5, window_bounds = array<i64: 128, 128>}, {pipeline_mode = #tpu.pipeline_mode<synchronous>, transform_indices = @transform_6, window_bounds = array<i64: 1, 128>}, {pipeline_mode = #tpu.pipeline_mode<synchronous>, transform_indices = @transform_7, window_bounds = array<i64: 1, 128>}, {pipeline_mode = #tpu.pipeline_mode<synchronous>, transform_indices = @transform_8, window_bounds = array<i64: 1, 1>}, {transform_indices = @transform_9, window_bounds = array<i64: 1, 16>}]} {
    %c0 = arith.constant 0 : index
    %c0_0 = arith.constant 0 : index
    %0 = vector.load %arg1[%c0, %c0_0] : memref<16x16xf32, #tpu.memory_space<vmem>>, vector<16x16xf32>
    %1 = arith.truncf %0 : vector<16x16xf32> to vector<16x16xbf16>
    %c0_1 = arith.constant 0 : index
    %c0_2 = arith.constant 0 : index
    %2 = vector.load %arg3[%c0_1, %c0_2] : memref<16x128xbf16, #tpu.memory_space<vmem>>, vector<16x128xbf16>
    %cst = arith.constant dense<0.000000e+00> : vector<16x128xf32>
    %3 = tpu.matmul %1, %2, %cst {dimension_numbers = #tpu.dot_dimension_numbers<[1], [0], [0], [1], [0, 0, 1, 1], [], []>} : vector<16x16xbf16>, vector<16x128xbf16>, vector<16x128xf32> -> vector<16x128xf32>
    %c0_3 = arith.constant 0 : index
    %c0_4 = arith.constant 0 : index
    %4 = vector.load %arg2[%c0_3, %c0_4] : memref<16x8xf32, #tpu.memory_space<vmem>>, vector<16x8xf32>
    %5 = arith.truncf %4 : vector<16x8xf32> to vector<16x8xbf16>
    %c0_5 = arith.constant 0 : index
    %c0_6 = arith.constant 0 : index
    %6 = vector.load %arg4[%c0_5, %c0_6] : memref<8x128xbf16, #tpu.memory_space<vmem>>, vector<8x128xbf16>
    %cst_7 = arith.constant dense<0.000000e+00> : vector<16x128xf32>
    %7 = tpu.matmul %5, %6, %cst_7 {dimension_numbers = #tpu.dot_dimension_numbers<[1], [0], [0], [1], [0, 0, 1, 1], [], []>} : vector<16x8xbf16>, vector<8x128xbf16>, vector<16x128xf32> -> vector<16x128xf32>
    %8 = arith.addf %3, %7 : vector<16x128xf32>
    %c0_8 = arith.constant 0 : index
    %c0_9 = arith.constant 0 : index
    %9 = vector.load %arg5[%c0_8, %c0_9] : memref<1x128xf32, #tpu.memory_space<vmem>>, vector<1x128xf32>
    %10 = vector.broadcast %9 : vector<1x128xf32> to vector<16x128xf32>
    %11 = arith.addf %8, %10 : vector<16x128xf32>
    %cst_10 = arith.constant 0.00999999977 : f32
    %12 = vector.broadcast %cst_10 : f32 to vector<16x128xf32>
    %13 = arith.mulf %12, %11 : vector<16x128xf32>
    %14 = arith.maximumf %11, %13 : vector<16x128xf32>
    %15 = arith.truncf %14 : vector<16x128xf32> to vector<16x128xbf16>
    %c0_11 = arith.constant 0 : index
    %c0_12 = arith.constant 0 : index
    %16 = vector.load %arg6[%c0_11, %c0_12] : memref<128x128xbf16, #tpu.memory_space<vmem>>, vector<128x128xbf16>
    %cst_13 = arith.constant dense<0.000000e+00> : vector<16x128xf32>
    %17 = tpu.matmul %15, %16, %cst_13 {dimension_numbers = #tpu.dot_dimension_numbers<[1], [0], [0], [1], [0, 0, 1, 1], [], []>} : vector<16x128xbf16>, vector<128x128xbf16>, vector<16x128xf32> -> vector<16x128xf32>
    %c0_14 = arith.constant 0 : index
    %c0_15 = arith.constant 0 : index
    %18 = vector.load %arg7[%c0_14, %c0_15] : memref<1x128xf32, #tpu.memory_space<vmem>>, vector<1x128xf32>
    %19 = vector.broadcast %18 : vector<1x128xf32> to vector<16x128xf32>
    %20 = arith.addf %17, %19 : vector<16x128xf32>
    %cst_16 = arith.constant 0.00999999977 : f32
    %21 = vector.broadcast %cst_16 : f32 to vector<16x128xf32>
    %22 = arith.mulf %21, %20 : vector<16x128xf32>
    %23 = arith.maximumf %20, %22 : vector<16x128xf32>
    %c0_17 = arith.constant 0 : index
    %c0_18 = arith.constant 0 : index
    %24 = vector.load %arg8[%c0_17, %c0_18] : memref<1x128xbf16, #tpu.memory_space<vmem>>, vector<1x128xbf16>
    %25 = arith.truncf %23 : vector<16x128xf32> to vector<16x128xbf16>
    %cst_19 = arith.constant dense<0.000000e+00> : vector<1x16xf32>
    %26 = tpu.matmul %24, %25, %cst_19 {dimension_numbers = #tpu.dot_dimension_numbers<[1], [1], [0], [0], [0, 0, 1, 0], [], []>} : vector<1x128xbf16>, vector<16x128xbf16>, vector<1x16xf32> -> vector<1x16xf32>
    %c0_20 = arith.constant 0 : index
    %c0_21 = arith.constant 0 : index
    %27 = vector.load %arg9[%c0_20, %c0_21] : memref<1x1xf32, #tpu.memory_space<vmem>>, vector<1x1xf32>
    %28 = vector.broadcast %27 : vector<1x1xf32> to vector<1x16xf32>
    %29 = arith.addf %26, %28 : vector<1x16xf32>
    %c0_22 = arith.constant 0 : index
    %c0_23 = arith.constant 0 : index
    %30 = vector.load %arg10[%c0_22, %c0_23] : memref<1x16xf32, #tpu.memory_space<vmem>>, vector<1x16xf32>
    tpu.vector_store %arg10[%c0_22, %c0_23], %29 {strides = array<i32>} : memref<1x16xf32, #tpu.memory_space<vmem>>, vector<1x16xf32>,
    return
  }
  func.func @transform_0(%arg0: i32) -> (i32, i32) {
    %c0_i32 = arith.constant 0 : i32
    %c0_i32_0 = arith.constant 0 : i32
    return %arg0, %c0_i32 : i32, i32
  }
  func.func @transform_1(%arg0: i32) -> (i32, i32) {
    %c0_i32 = arith.constant 0 : i32
    %c0_i32_0 = arith.constant 0 : i32
    return %arg0, %c0_i32 : i32, i32
  }
  func.func @transform_2(%arg0: i32) -> (i32, i32) {
    %c0_i32 = arith.constant 0 : i32
    %c0_i32_0 = arith.constant 0 : i32
    %c0_i32_1 = arith.constant 0 : i32
    return %c0_i32, %c0_i32_0 : i32, i32
  }
  func.func @transform_3(%arg0: i32) -> (i32, i32) {
    %c0_i32 = arith.constant 0 : i32
    %c0_i32_0 = arith.constant 0 : i32
    %c0_i32_1 = arith.constant 0 : i32
    return %c0_i32, %c0_i32_0 : i32, i32
  }
  func.func @transform_4(%arg0: i32) -> (i32, i32) {
    %c0_i32 = arith.constant 0 : i32
    %c0_i32_0 = arith.constant 0 : i32
    %c0_i32_1 = arith.constant 0 : i32
    return %c0_i32, %c0_i32_0 : i32, i32
  }
  func.func @transform_5(%arg0: i32) -> (i32, i32) {
    %c0_i32 = arith.constant 0 : i32
    %c0_i32_0 = arith.constant 0 : i32
    %c0_i32_1 = arith.constant 0 : i32
    return %c0_i32, %c0_i32_0 : i32, i32
  }
  func.func @transform_6(%arg0: i32) -> (i32, i32) {
    %c0_i32 = arith.constant 0 : i32
    %c0_i32_0 = arith.constant 0 : i32
    %c0_i32_1 = arith.constant 0 : i32
    return %c0_i32, %c0_i32_0 : i32, i32
  }
  func.func @transform_7(%arg0: i32) -> (i32, i32) {
    %c0_i32 = arith.constant 0 : i32
    %c0_i32_0 = arith.constant 0 : i32
    %c0_i32_1 = arith.constant 0 : i32
    return %c0_i32, %c0_i32_0 : i32, i32
  }
  func.func @transform_8(%arg0: i32) -> (i32, i32) {
    %c0_i32 = arith.constant 0 : i32
    %c0_i32_0 = arith.constant 0 : i32
    %c0_i32_1 = arith.constant 0 : i32
    return %c0_i32, %c0_i32_0 : i32, i32
  }
  func.func @transform_9(%arg0: i32) -> (i32, i32) {
    %c0_i32 = arith.constant 0 : i32
    %c0_i32_0 = arith.constant 0 : i32
    return %c0_i32, %arg0 : i32, i32
  }
}

</mosaic_0001>

<llo_original>
// kernel: critic_forward.1
$region0: #{critic_forward.1}
  #allocation0 [shape = 'u32[]', space=smem, size = 0x4, offset = 0x4, fixed_abs, tag = 'smem constant byte address 0x4 - core index']
  #allocation1 [shape = 'u32[144,128]{1,0:T(1,128)}', space=vmem, size = 0x12000, scoped, tag = 'internal scratch']
  #allocation2 [shape = 'f32[1,1]{1,0:T(1,128)S(1)}', space=vmem, size = 0x200, scoped, tag = 'scoped memory for critic_forward.1']
  %s0 = inlined_call_operand.vmem [shape: f32[16,16], index: 0, kind: input, shape index: {}]
  %s1 = inlined_call_operand.vmem [shape: f32[16,8], index: 1, kind: input, shape index: {}]
  %s2 = inlined_call_operand.vmem [shape: bf16[16,128], index: 2, kind: input, shape index: {}]
  %s3 = inlined_call_operand.vmem [shape: bf16[8,128], index: 3, kind: input, shape index: {}]
  %s4 = inlined_call_operand.vmem [shape: f32[1,128], index: 4, kind: input, shape index: {}]
  %s5 = inlined_call_operand.vmem [shape: bf16[128,128], index: 5, kind: input, shape index: {}]
  %s6 = inlined_call_operand.vmem [shape: f32[1,128], index: 6, kind: input, shape index: {}]
  %s7 = inlined_call_operand.vmem [shape: bf16[1,128], index: 7, kind: input, shape index: {}]
  %s8 = inlined_call_operand.<no memory space> [shape: f32[1,1], index: 8, kind: input, shape index: {}]
  %s9 = inlined_call_operand.vmem [shape: f32[1,16], index: 9, kind: output, shape index: {}]
  %s10 = sld [smem:[#allocation0]]
  $region46: #{critic_forward.1} parent=0
    _
  %s12 = ssub.s32 1, %s10
  %s13 = scalar_select 0, %s12, %s10
  %v14 = vstv %s8
  %15 = vst [vmem:[#allocation2] sm:$0x1] %v14
  // Predicated region
  $region2: #{critic_forward.1} parent=0 // pred_check
    _
  $region3: #{critic_forward.1} parent=0 // pred_check_branch
    %17 = sbr.rel (0) target = $region5
  $region4: #{critic_forward.1} parent=0 // pred_region
    _
  $region5: #{critic_forward.1} parent=0 // pred_fallthru
    _
  // Predicated region
  $region6: #{critic_forward.1} parent=0 // pred_check
    _
  $region7: #{critic_forward.1} parent=0 // pred_check_branch
    %19 = sbr.rel (0) target = $region9
  $region8: #{critic_forward.1} parent=0 // pred_region
    _
  $region9: #{critic_forward.1} parent=0 // pred_fallthru
    _
  // Predicated region
  $region10: #{critic_forward.1} parent=0 // pred_check
    _
  $region11: #{critic_forward.1} parent=0 // pred_check_branch
    %21 = sbr.rel (0) target = $region13
  $region12: #{critic_forward.1} parent=0 // pred_region
    _
  $region13: #{critic_forward.1} parent=0 // pred_fallthru
    _
  // Predicated region
  $region14: #{critic_forward.1} parent=0 // pred_check
    _
  $region15: #{critic_forward.1} parent=0 // pred_check_branch
    %23 = sbr.rel (0) target = $region17
  $region16: #{critic_forward.1} parent=0 // pred_region
    _
  $region17: #{critic_forward.1} parent=0 // pred_fallthru
    _
  // Predicated region
  $region18: #{critic_forward.1} parent=0 // pred_check
    _
  $region19: #{critic_forward.1} parent=0 // pred_check_branch
    %25 = sbr.rel (0) target = $region21
  $region20: #{critic_forward.1} parent=0 // pred_region
    _
  $region21: #{critic_forward.1} parent=0 // pred_fallthru
    _
  // Predicated region
  $region22: #{critic_forward.1} parent=0 // pred_check
    _
  $region23: #{critic_forward.1} parent=0 // pred_check_branch
    %27 = sbr.rel (0) target = $region25
  $region24: #{critic_forward.1} parent=0 // pred_region
    _
  $region25: #{critic_forward.1} parent=0 // pred_fallthru
    _
  // Predicated region
  $region26: #{critic_forward.1} parent=0 // pred_check
    _
  $region27: #{critic_forward.1} parent=0 // pred_check_branch
    %29 = sbr.rel (0) target = $region29
  $region28: #{critic_forward.1} parent=0 // pred_region
    _
  $region29: #{critic_forward.1} parent=0 // pred_fallthru
    _
  // Predicated region
  $region30: #{critic_forward.1} parent=0 // pred_check
    _
  $region31: #{critic_forward.1} parent=0 // pred_check_branch
    %31 = sbr.rel (0) target = $region33
  $region32: #{critic_forward.1} parent=0 // pred_region
    _
  $region33: #{critic_forward.1} parent=0 // pred_fallthru
    _
  // Predicated region
  $region34: #{critic_forward.1} parent=0 // pred_check
    _
  $region35: #{critic_forward.1} parent=0 // pred_check_branch
    %33 = sbr.rel (0) target = $region37
  $region36: #{critic_forward.1} parent=0 // pred_region
    _
  $region37: #{critic_forward.1} parent=0 // pred_fallthru
    _
  %v35 = vld [vmem:[%s0] sm:$0xff]
  %v36 = vld [vmem:[%s0 + $0x8] sm:$0xff]
  %v37 = vpack.c.bf16 %v36, %v35
  %v38 = vld [vmem:[%s2] sm:$0xf]
  %v39 = vld [vmem:[%s2 + $0x4] sm:$0xf]
  %v40 = vld [vmem:[%s1] sm:$0xff]
  %v41 = vld [vmem:[%s1 + $0x8] sm:$0xff]
  %v42 = vpack.c.bf16 %v41, %v40
  %v43 = vld [vmem:[%s3] sm:$0xf]
  %vm44 = vcmask 64512
  %v46 = vsel %vm44, %v42, 0
  %vm48 = vcmask 1043456
  %v50 = vsel %vm48, %v43, 0
  %52 = vmatprep.subr.bf16.mxu0 0
  %53 = vmatpush1.bf16.msra.mxu0 %v50
  %54 = vmatprep.subr.bf16.mxu0 0
  %55 = vmatpush1.bf16.msra.mxu0 0
  %56 = vmatprep.subr.bf16.mxu0 0
  %57 = vmatpush1.bf16.msra.mxu0 0
  %58 = vmatprep.subr.bf16.mxu0 0
  %59 = vmatpush1.bf16.msra.mxu0 0
  %60 = vmatprep.subr.bf16.mxu0 0
  %61 = vmatpush1.bf16.msra.mxu0 0
  %62 = vmatprep.subr.bf16.mxu0 0
  %63 = vmatpush1.bf16.msra.mxu0 0
  %64 = vmatprep.subr.bf16.mxu0 0
  %65 = vmatpush1.bf16.msra.mxu0 0
  %66 = vmatprep.subr.bf16.mxu0 0
  %67 = vmatpush1.bf16.msra.mxu0 0
  %68 = vmatprep.subr.bf16.mxu0 0
  %69 = vmatpush1.bf16.msra.mxu0 0
  %70 = vmatprep.subr.bf16.mxu0 0
  %71 = vmatpush1.bf16.msra.mxu0 0
  %72 = vmatprep.subr.bf16.mxu0 0
  %73 = vmatpush1.bf16.msra.mxu0 0
  %74 = vmatprep.subr.bf16.mxu0 0
  %75 = vmatpush1.bf16.msra.mxu0 0
  %76 = vmatprep.subr.bf16.mxu0 0
  %77 = vmatpush1.bf16.msra.mxu0 0
  %78 = vmatprep.subr.bf16.mxu0 0
  %79 = vmatpush1.bf16.msra.mxu0 0
  %80 = vmatprep.subr.bf16.mxu0 0
  %81 = vmatpush1.bf16.msra.mxu0 0
  %82 = vmatprep.subr.bf16.mxu0 0
  %83 = vmatpush1.bf16.msra.mxu0 0
  %84 = vmatprep.mubr.bf16.mxu0 0
  %85 = vmatmul.mubr.bf16.gmra.mrb[0].mxu0 %v46
  %v86 = vpop.f32.mrb[0].mxu0
  %v87 = vadd.f32 0.0, %v86
  %v88 = vpop.f32.mrb[0].mxu0
  %v89 = vpop.f32.mrb[0].mxu0
  %v90 = vadd.f32 0.0, %v89
  %v91 = vpop.f32.mrb[0].mxu0
  %92 = vdwg.mxu0
  %v95 = vunpack.c.l.b16 %v38
  %v96 = vunpack.c.l.b16 %v39
  %v97 = vpack.c.b16 %v96, %v95
  %vm99 = vcmask 130048
  %v101 = vsel %vm99, %v37, 0
  %103 = vmatprep.subr.bf16.mxu0 0
  %104 = vmatpush1.bf16.msra.mxu0 %v97
  %105 = vmatprep.subr.bf16.mxu0 0
  %106 = vmatpush1.bf16.msra.mxu0 0
  %107 = vmatprep.subr.bf16.mxu0 0
  %108 = vmatpush1.bf16.msra.mxu0 0
  %109 = vmatprep.subr.bf16.mxu0 0
  %110 = vmatpush1.bf16.msra.mxu0 0
  %111 = vmatprep.subr.bf16.mxu0 0
  %112 = vmatpush1.bf16.msra.mxu0 0
  %113 = vmatprep.subr.bf16.mxu0 0
  %114 = vmatpush1.bf16.msra.mxu0 0
  %115 = vmatprep.subr.bf16.mxu0 0
  %116 = vmatpush1.bf16.msra.mxu0 0
  %117 = vmatprep.subr.bf16.mxu0 0
  %118 = vmatpush1.bf16.msra.mxu0 0
  %119 = vmatprep.subr.bf16.mxu0 0
  %120 = vmatpush1.bf16.msra.mxu0 0
  %121 = vmatprep.subr.bf16.mxu0 0
  %122 = vmatpush1.bf16.msra.mxu0 0
  %123 = vmatprep.subr.bf16.mxu0 0
  %124 = vmatpush1.bf16.msra.mxu0 0
  %125 = vmatprep.subr.bf16.mxu0 0
  %126 = vmatpush1.bf16.msra.mxu0 0
  %127 = vmatprep.subr.bf16.mxu0 0
  %128 = vmatpush1.bf16.msra.mxu0 0
  %129 = vmatprep.subr.bf16.mxu0 0
  %130 = vmatpush1.bf16.msra.mxu0 0
  %131 = vmatprep.subr.bf16.mxu0 0
  %132 = vmatpush1.bf16.msra.mxu0 0
  %133 = vmatprep.subr.bf16.mxu0 0
  %134 = vmatpush1.bf16.msra.mxu0 0
  %135 = vmatprep.mubr.bf16.mxu0 0
  %136 = vmatmul.mubr.bf16.gmra.mrb[0].mxu0 %v101
  %v137 = vpop.f32.mrb[0].mxu0
  %v138 = vadd.f32 %v87, %v137
  %v139 = vpop.f32.mrb[0].mxu0
  %v140 = vpop.f32.mrb[0].mxu0
  %v141 = vadd.f32 %v90, %v140
  %v142 = vpop.f32.mrb[0].mxu0
  %143 = vdwg.mxu0
  %v144 = vld [vmem:[%s4] sm:$0x1]
  %v146 = vlaneseq
  %v147 = vshrl.u32 %v146, 7
  %v148 = vsub.s32 0, %v147
  %v149 = vrot.slane %v144, %v148
  %v151 = vadd.f32 %v138, %v149
  %v152 = vadd.f32 %v141, %v149
  %v153 = vmul.f32 %v151, 0.01
  %v154 = vmul.f32 %v152, 0.01
  %v155 = vmax.f32 %v151, %v153
  %v156 = vmax.f32 %v152, %v154
  %v157 = vpack.c.bf16 %v156, %v155
  %v158 = vld [vmem:[%s5] sm:$0xf]
  %v159 = vld [vmem:[%s5 + $0x4] sm:$0xf]
  %v160 = vld [vmem:[%s5 + $0x8] sm:$0xf]
  %v161 = vld [vmem:[%s5 + $0xc] sm:$0xf]
  %v162 = vld [vmem:[%s5 + $0x10] sm:$0xf]
  %v163 = vld [vmem:[%s5 + $0x14] sm:$0xf]
  %v164 = vld [vmem:[%s5 + $0x18] sm:$0xf]
  %v165 = vld [vmem:[%s5 + $0x1c] sm:$0xf]
  %v166 = vld [vmem:[%s5 + $0x20] sm:$0xf]
  %v167 = vld [vmem:[%s5 + $0x24] sm:$0xf]
  %v168 = vld [vmem:[%s5 + $0x28] sm:$0xf]
  %v169 = vld [vmem:[%s5 + $0x2c] sm:$0xf]
  %v170 = vld [vmem:[%s5 + $0x30] sm:$0xf]
  %v171 = vld [vmem:[%s5 + $0x34] sm:$0xf]
  %v172 = vld [vmem:[%s5 + $0x38] sm:$0xf]
  %v173 = vld [vmem:[%s5 + $0x3c] sm:$0xf]
  %v174 = vld [vmem:[%s6] sm:$0x1]
  %v176 = vlaneseq
  %v177 = vshrl.u32 %v176, 7
  %v178 = vsub.s32 0, %v177
  %v179 = vrot.slane %v174, %v178
  %v197 = vunpack.c.l.b16 %v158
  %v198 = vunpack.c.l.b16 %v159
  %v199 = vunpack.c.l.b16 %v160
  %v200 = vunpack.c.l.b16 %v161
  %v201 = vunpack.c.l.b16 %v162
  %v202 = vunpack.c.l.b16 %v163
  %v203 = vunpack.c.l.b16 %v164
  %v204 = vunpack.c.l.b16 %v165
  %v205 = vunpack.c.l.b16 %v166
  %v206 = vunpack.c.l.b16 %v167
  %v207 = vunpack.c.l.b16 %v168
  %v208 = vunpack.c.l.b16 %v169
  %v209 = vunpack.c.l.b16 %v170
  %v210 = vunpack.c.l.b16 %v171
  %v211 = vunpack.c.l.b16 %v172
  %v212 = vunpack.c.l.b16 %v173
  %v213 = vpack.c.b16 %v198, %v197
  %v214 = vpack.c.b16 %v200, %v199
  %v215 = vpack.c.b16 %v202, %v201
  %v216 = vpack.c.b16 %v204, %v203
  %v217 = vpack.c.b16 %v206, %v205
  %v218 = vpack.c.b16 %v208, %v207
  %v219 = vpack.c.b16 %v210, %v209
  %v220 = vpack.c.b16 %v212, %v211
  %229 = vmatprep.subr.bf16.mxu0 0
  %230 = vmatpush1.bf16.msra.mxu0 %v213
  %231 = vmatprep.subr.bf16.mxu0 0
  %232 = vmatpush1.bf16.msra.mxu0 %v214
  %233 = vmatprep.subr.bf16.mxu0 0
  %234 = vmatpush1.bf16.msra.mxu0 %v215
  %235 = vmatprep.subr.bf16.mxu0 0
  %236 = vmatpush1.bf16.msra.mxu0 %v216
  %237 = vmatprep.subr.bf16.mxu0 0
  %238 = vmatpush1.bf16.msra.mxu0 %v217
  %239 = vmatprep.subr.bf16.mxu0 0
  %240 = vmatpush1.bf16.msra.mxu0 %v218
  %241 = vmatprep.subr.bf16.mxu0 0
  %242 = vmatpush1.bf16.msra.mxu0 %v219
  %243 = vmatprep.subr.bf16.mxu0 0
  %244 = vmatpush1.bf16.msra.mxu0 %v220
  %245 = vmatprep.subr.bf16.mxu0 0
  %246 = vmatpush1.bf16.msra.mxu0 0
  %247 = vmatprep.subr.bf16.mxu0 0
  %248 = vmatpush1.bf16.msra.mxu0 0
  %249 = vmatprep.subr.bf16.mxu0 0
  %250 = vmatpush1.bf16.msra.mxu0 0
  %251 = vmatprep.subr.bf16.mxu0 0
  %252 = vmatpush1.bf16.msra.mxu0 0
  %253 = vmatprep.subr.bf16.mxu0 0
  %254 = vmatpush1.bf16.msra.mxu0 0
  %255 = vmatprep.subr.bf16.mxu0 0
  %256 = vmatpush1.bf16.msra.mxu0 0
  %257 = vmatprep.subr.bf16.mxu0 0
  %258 = vmatpush1.bf16.msra.mxu0 0
  %259 = vmatprep.subr.bf16.mxu0 0
  %260 = vmatpush1.bf16.msra.mxu0 0
  %261 = vmatprep.mubr.bf16.mxu0 0
  %262 = vmatmul.mubr.bf16.gmra.mrb[0].mxu0 %v157
  %v263 = vpop.f32.mrb[0].mxu0
  %v264 = vadd.f32 %v179, %v263
  %v265 = vpop.f32.mrb[0].mxu0
  %v266 = vpop.f32.mrb[0].mxu0
  %v267 = vadd.f32 %v179, %v266
  %v268 = vpop.f32.mrb[0].mxu0
  %269 = vdwg.mxu0
  %v270 = vmul.f32 %v264, 0.01
  %v271 = vmul.f32 %v267, 0.01
  %v272 = vmax.f32 %v264, %v270
  %v273 = vmax.f32 %v267, %v271
  %v274 = vld [vmem:[%s7] sm:$0x1]
  %v275 = vpack.c.bf16 %v273, %v272
  %v276 = vld [vmem:[#allocation2] sm:$0x1]
  %278 = vset.pattern.permute.xlu0 0
  %279 = vperm.xlu0 %278, %v276
  %v280 = vpop.permute.xlu0 %279
  %v282 = vlaneseq
  %v283 = vshrl.u32 %v282, 7
  %v284 = vsub.s32 0, %v283
  %v285 = vrot.slane %v280, %v284
  %286 = vmatprep.subr.bf16.mxu0 0
  %287 = vmatpush1.bf16.xpose.msra.mxu0 %v275
  %288 = vmatprep.subr.bf16.mxu0 0
  %289 = vmatpush1.bf16.xpose.msra.mxu0 0
  %290 = vmatprep.subr.bf16.mxu0 0
  %291 = vmatpush1.bf16.xpose.msra.mxu0 0
  %292 = vmatprep.subr.bf16.mxu0 0
  %293 = vmatpush1.bf16.xpose.msra.mxu0 0
  %294 = vmatprep.subr.bf16.mxu0 0
  %295 = vmatpush1.bf16.xpose.msra.mxu0 0
  %296 = vmatprep.subr.bf16.mxu0 0
  %297 = vmatpush1.bf16.xpose.msra.mxu0 0
  %298 = vmatprep.subr.bf16.mxu0 0
  %299 = vmatpush1.bf16.xpose.msra.mxu0 0
  %300 = vmatprep.subr.bf16.mxu0 0
  %301 = vmatpush1.bf16.xpose.msra.mxu0 0
  %302 = vmatprep.subr.bf16.mxu0 0
  %303 = vmatpush1.bf16.xpose.msra.mxu0 0
  %304 = vmatprep.subr.bf16.mxu0 0
  %305 = vmatpush1.bf16.xpose.msra.mxu0 0
  %306 = vmatprep.subr.bf16.mxu0 0
  %307 = vmatpush1.bf16.xpose.msra.mxu0 0
  %308 = vmatprep.subr.bf16.mxu0 0
  %309 = vmatpush1.bf16.xpose.msra.mxu0 0
  %310 = vmatprep.subr.bf16.mxu0 0
  %311 = vmatpush1.bf16.xpose.msra.mxu0 0
  %312 = vmatprep.subr.bf16.mxu0 0
  %313 = vmatpush1.bf16.xpose.msra.mxu0 0
  %314 = vmatprep.subr.bf16.mxu0 0
  %315 = vmatpush1.bf16.xpose.msra.mxu0 0
  %316 = vmatprep.subr.bf16.mxu0 0
  %317 = vmatpush1.bf16.xpose.msra.mxu0 0
  %318 = vmatprep.mubr.bf16.mxu0 0
  %319 = vmatmul.mubr.bf16.gmra.mrb[0].mxu0 %v274
  %v320 = vpop.f32.mrb[0].mxu0
  %v321 = vadd.f32 %v285, %v320
  %v322 = vpop.f32.mrb[0].mxu0
  %v323 = vpop.f32.mrb[0].mxu0
  %v324 = vpop.f32.mrb[0].mxu0
  %325 = vdwg.mxu0
  %vm326 = vcmask 122880
  %327 = vst.msk [vmem:[%s9] sm:$0x1] %vm326, %v321
  // Predicated region
  $region38: #{critic_forward.1} parent=0 // pred_check
    _
  $region39: #{critic_forward.1} parent=0 // pred_check_branch
    %329 = sbr.rel (0) target = $region41
  $region40: #{critic_forward.1} parent=0 // pred_region
    _
  $region41: #{critic_forward.1} parent=0 // pred_fallthru
    _
  // Predicated region
  $region42: #{critic_forward.1} parent=0 // pred_check
    _
  $region43: #{critic_forward.1} parent=0 // pred_check_branch
    %331 = sbr.rel (0) target = $region45
  $region44: #{critic_forward.1} parent=0 // pred_region
    _
  $region45: #{critic_forward.1} parent=0 // pred_fallthru
    _

</llo_original>
